<compile_context>
chip_gen: v7x
topology: tpu7x:2x2x1
jax: 0.10.0
libtpu: 0.0.40
codegen_flags: <defaults>
</compile_context>

<pallas_src>
import functools
import numpy as np
import jax
import jax.numpy as jnp
from jax.experimental import pallas as pl
from jax.experimental.pallas import tpu as pltpu


_ein = functools.partial(jnp.einsum, precision=jax.lax.Precision.HIGHEST)


def _round_up(x, m):
    return ((x + m - 1) // m) * m


# ----------------------------------------------------------------------------
# Pallas kernel: fused 1x1 conv (bf16 matmul) + stage-sum add + bias + ReLU
# ----------------------------------------------------------------------------
def _bottleneck_kernel(x_ref, w_ref, s_ref, b_ref, o_ref):
    # x_ref: (TM, K) bf16   w_ref: (K, N) bf16
    # s_ref: (TM, N) f32    b_ref: (1, N) f32   o_ref: (TM, N) f32
    acc = jnp.dot(x_ref[...], w_ref[...], preferred_element_type=jnp.float32)
    o_ref[...] = jnp.maximum(acc + s_ref[...] + b_ref[...], 0.0).astype(o_ref.dtype)


def _pick_tile_m(M, K_pad, N_pad, *, budget_bytes=24 * 1024 * 1024):
    """Largest M tile whose double-buffered VMEM footprint fits the budget."""
    def vmem_bytes(tm):
        return (2 * tm * K_pad * 2          # x tile, bf16, double-buffered
                + 2 * tm * N_pad * 4        # stage-sum tile, f32, double-buffered
                + 2 * tm * N_pad * 4        # out tile, f32, double-buffered
                + 2 * K_pad * N_pad * 2     # resident weight, bf16 (2 buffers)
                + 2 * N_pad * 4)            # bias
    tm = 128
    for cand in (2048, 1536, 1024, 768, 512, 384, 256, 128):
        if vmem_bytes(cand) <= budget_bytes:
            tm = cand
            break
    # Keep at least 2 grid steps when M allows it so the "parallel" grid axis
    # can shard across v7x's two TensorCores (no effect on single-TC v5e/v6e),
    # and avoid padding M far beyond its real extent.
    m_pad = _round_up(M, 128)
    if m_pad > 128:
        tm = min(tm, max(128, _round_up((m_pad + 1) // 2, 128)))
    else:
        tm = 128
    return tm


def bottleneck_conv_relu(x_flat, stage_flat, w, b):
    """ReLU(x_flat @ w + stage_flat + b).

    x_flat:     (M, K) f32  -- NHWC-flattened input feature map
    stage_flat: (M, N) f32  -- summed, upsampled pyramid-stage contributions
    w:          (K, N) f32  -- feats-slice of the bottleneck 1x1 conv weight
    b:          (N,)   f32  -- bottleneck bias
    returns     (M, N) f32
    """
    M, K = x_flat.shape
    N = w.shape[1]

    # Lane-dense padding of the contraction and output-lane dims.
    K_pad = _round_up(K, 128)
    N_pad = _round_up(N, 128)
    tm = _pick_tile_m(M, K_pad, N_pad)
    M_pad = _round_up(M, tm)

    x_p = jnp.zeros((M_pad, K_pad), jnp.bfloat16).at[:M, :K].set(
        x_flat.astype(jnp.bfloat16))
    w_p = jnp.zeros((K_pad, N_pad), jnp.bfloat16).at[:K, :N].set(
        w.astype(jnp.bfloat16))
    s_p = jnp.zeros((M_pad, N_pad), jnp.float32).at[:M, :N].set(stage_flat)
    b_p = jnp.zeros((1, N_pad), jnp.float32).at[0, :N].set(b)

    cost = pl.CostEstimate(
        flops=2 * M_pad * K_pad * N_pad,
        transcendentals=0,
        bytes_accessed=(M_pad * K_pad * 2 + K_pad * N_pad * 2
                        + 2 * M_pad * N_pad * 4 + N_pad * 4),
    )

    # TODO(synk): single-buffer the grid-invariant weight/bias blocks
    # (pipeline_mode=pl.Buffered(1)) to free VMEM for a bigger M tile on v7x.
    out_p = pl.pallas_call(
        _bottleneck_kernel,
        out_shape=jax.ShapeDtypeStruct((M_pad, N_pad), jnp.float32),
        grid_spec=pltpu.PrefetchScalarGridSpec(
            num_scalar_prefetch=0,
            grid=(M_pad // tm,),
            in_specs=[
                pl.BlockSpec((tm, K_pad), lambda i: (i, 0)),
                pl.BlockSpec((K_pad, N_pad), lambda i: (0, 0)),
                pl.BlockSpec((tm, N_pad), lambda i: (i, 0)),
                pl.BlockSpec((1, N_pad), lambda i: (0, 0)),
            ],
            out_specs=pl.BlockSpec((tm, N_pad), lambda i: (i, 0)),
        ),
        compiler_params=pltpu.CompilerParams(
            dimension_semantics=("parallel",),
            vmem_limit_bytes=32 * 1024 * 1024,
        ),
        cost_estimate=cost,
    )(x_p, w_p, s_p, b_p)
    return out_p[:M, :N]


# ----------------------------------------------------------------------------
# Small dense matrices for AdaptiveAvgPool2d and bilinear upsample (XLA glue)
# ----------------------------------------------------------------------------
def adaptive_pool_matrix(in_size, out_size):
    """P[i, :] averages the PyTorch adaptive-avg-pool bin i.  Shape (out, in)."""
    P = np.zeros((out_size, in_size), dtype=np.float32)
    for i in range(out_size):
        start = (i * in_size) // out_size
        end = -(-((i + 1) * in_size) // out_size)  # ceil
        P[i, start:end] = 1.0 / (end - start)
    return P


def bilinear_upsample_matrix(in_size, out_size):
    """U @ v performs 1-D bilinear upsample, align_corners=False. Shape (out, in)."""
    # NOTE: modern PyTorch F.upsample(mode='bilinear') defaults to
    # align_corners=False; legacy (<0.4) PSPNet code used align_corners=True.
    # TODO(synk): switch to align_corners=True if matching legacy PyTorch.
    U = np.zeros((out_size, in_size), dtype=np.float32)
    scale = in_size / out_size
    for i in range(out_size):
        src = max((i + 0.5) * scale - 0.5, 0.0)
        i0 = min(int(np.floor(src)), in_size - 1)
        i1 = min(i0 + 1, in_size - 1)
        lam = src - i0
        U[i, i0] += 1.0 - lam
        U[i, i1] += lam
    return U


# ----------------------------------------------------------------------------
# PSPModule forward
# ----------------------------------------------------------------------------
def psp_module_forward(feats, stage_weights, w_bottle, b_bottle, sizes):
    """feats: (B, C, H, W) NCHW.  Returns (B, OUT, H, W)."""
    B, C, H, W = feats.shape
    OUT = w_bottle.shape[1]
    n_stages = len(sizes)

    # PyTorch concat order: [stage_0, ..., stage_{n-1}, feats] along channels,
    # so w_bottle (5C, OUT) splits into per-source (C, OUT) chunks.
    chunks = [w_bottle[i * C:(i + 1) * C] for i in range(n_stages + 1)]
    w_feats = chunks[-1]

    # Pyramid stages: adaptive-avg-pool -> stage 1x1 conv folded with the
    # corresponding bottleneck chunk on the tiny s x s grid -> bilinear
    # upsample in the OUT-channel domain.  Mathematically identical to the
    # reference order (1x1 conv and upsample commute); avoids materializing
    # and re-reading the (B, 5C, H, W) concat.
    stage_sum = jnp.zeros((B, H, W, OUT), jnp.float32)
    for size, w_stage, w_chunk in zip(sizes, stage_weights, chunks[:n_stages]):
        Ph = jnp.asarray(adaptive_pool_matrix(H, size))
        Pw = jnp.asarray(adaptive_pool_matrix(W, size))
        Uh = jnp.asarray(bilinear_upsample_matrix(size, H))
        Uw = jnp.asarray(bilinear_upsample_matrix(size, W))
        pooled = _ein('sh,bchw,tw->bcst', Ph, feats, Pw)       # (B, C, s, s)
        w_fold = _ein('oc,on->cn', w_stage, w_chunk)           # (C, OUT)
        z = _ein('bcst,cn->bnst', pooled, w_fold)              # (B, OUT, s, s)
        stage_sum = stage_sum + _ein('hs,bnst,wt->bhwn', Uh, z, Uw)

    feats_flat = jnp.transpose(feats, (0, 2, 3, 1)).reshape(B * H * W, C)
    stage_flat = stage_sum.reshape(B * H * W, OUT)
    out_flat = bottleneck_conv_relu(feats_flat, stage_flat, w_feats, b_bottle)
    return out_flat.reshape(B, H, W, OUT).transpose(0, 3, 1, 2)


# ----------------------------------------------------------------------------
# Demo + correctness check
# ----------------------------------------------------------------------------
if __name__ == "__main__":
    B, C, H, W = 2, 4, 16, 16
    OUT = 32
    SIZES = (1, 2, 3, 6)

    key = jax.random.PRNGKey(0)
    k_x, k_s, k_wb, k_bb = jax.random.split(key, 4)

    x = jax.random.normal(k_x, (B, C, H, W), dtype=jnp.float32)

    # Stage 1x1 convs: (C, C) each, bias-free (PyTorch weight (C, C, 1, 1)).
    stage_keys = jax.random.split(k_s, len(SIZES))
    stage_weights = [
        jax.random.normal(k, (C, C), dtype=jnp.float32) * 0.1 for k in stage_keys
    ]
    # Bottleneck 1x1 conv: PyTorch weight (OUT, 5*C, 1, 1) + bias (OUT,).
    # Stored here transposed as (5*C, OUT) for the matmul kernel.
    w_bottle = jax.random.normal(k_wb, (C * (len(SIZES) + 1), OUT),
                                 dtype=jnp.float32) * 0.1
    b_bottle = jax.random.normal(k_bb, (OUT,), dtype=jnp.float32) * 0.1

    out = psp_module_forward(x, stage_weights, w_bottle, b_bottle, SIZES)
    out = jax.block_until_ready(out)
    assert out.shape == (B, OUT, H, W)

    # Reference: the literal PyTorch computation order (pool -> stage conv ->
    # upsample -> concat -> bottleneck conv + bias -> ReLU), all in f32.
    cat_ref = []
    for size, ws in zip(SIZES, stage_weights):
        Ph = jnp.asarray(adaptive_pool_matrix(H, size))
        Pw = jnp.asarray(adaptive_pool_matrix(W, size))
        Uh = jnp.asarray(bilinear_upsample_matrix(size, H))
        Uw = jnp.asarray(bilinear_upsample_matrix(size, W))
        pooled = _ein('sh,bchw,tw->bcst', Ph, x, Pw)
        y = _ein('oc,bcst->bost', ws, pooled)
        cat_ref.append(_ein('hs,bost,wt->bohw', Uh, y, Uw))
    cat_ref.append(x)
    cat_ref = jnp.concatenate(cat_ref, axis=1)
    ref = jnp.maximum(
        _ein('bchw,co->bohw', cat_ref, w_bottle) + b_bottle[None, :, None, None],
        0.0)
    # Tolerance accounts for the bf16 cast of the kernel matmul operands.
    np.testing.assert_allclose(np.asarray(out), np.asarray(ref),
                               atol=5e-2, rtol=5e-2)

    print("KERNEL_OK")
</pallas_src>

<mosaic_0001>
module attributes {stable_mosaic.version = 11 : i64} {
  func.func @_bottleneck_kernel(%arg0: i32, %arg1: memref<256x128xbf16, #tpu.memory_space<vmem>>, %arg2: memref<128x128xbf16, #tpu.memory_space<vmem>>, %arg3: memref<256x128xf32, #tpu.memory_space<vmem>>, %arg4: memref<1x128xf32, #tpu.memory_space<vmem>>, %arg5: memref<256x128xf32, #tpu.memory_space<vmem>>) attributes {dimension_semantics = [#tpu.dimension_semantics<parallel>], iteration_bounds = array<i64: 2>, scalar_prefetch = 0 : i64, scratch_operands = 0 : i64, tpu.core_type = #tpu.core_type<tc>, window_params = [{transform_indices = @transform_0, window_bounds = array<i64: 256, 128>}, {pipeline_mode = #tpu.pipeline_mode<synchronous>, transform_indices = @transform_1, window_bounds = array<i64: 128, 128>}, {transform_indices = @transform_2, window_bounds = array<i64: 256, 128>}, {pipeline_mode = #tpu.pipeline_mode<synchronous>, transform_indices = @transform_3, window_bounds = array<i64: 1, 128>}, {transform_indices = @transform_4, window_bounds = array<i64: 256, 128>}]} {
    %c0 = arith.constant 0 : index
    %c0_0 = arith.constant 0 : index
    %0 = vector.load %arg1[%c0, %c0_0] : memref<256x128xbf16, #tpu.memory_space<vmem>>, vector<256x128xbf16>
    %c0_1 = arith.constant 0 : index
    %c0_2 = arith.constant 0 : index
    %1 = vector.load %arg2[%c0_1, %c0_2] : memref<128x128xbf16, #tpu.memory_space<vmem>>, vector<128x128xbf16>
    %cst = arith.constant dense<0.000000e+00> : vector<256x128xf32>
    %2 = tpu.matmul %0, %1, %cst {dimension_numbers = #tpu.dot_dimension_numbers<[1], [0], [0], [1], [0, 0, 1, 1], [], []>} : vector<256x128xbf16>, vector<128x128xbf16>, vector<256x128xf32> -> vector<256x128xf32>
    %c0_3 = arith.constant 0 : index
    %c0_4 = arith.constant 0 : index
    %3 = vector.load %arg3[%c0_3, %c0_4] : memref<256x128xf32, #tpu.memory_space<vmem>>, vector<256x128xf32>
    %4 = arith.addf %2, %3 : vector<256x128xf32>
    %c0_5 = arith.constant 0 : index
    %c0_6 = arith.constant 0 : index
    %5 = vector.load %arg4[%c0_5, %c0_6] : memref<1x128xf32, #tpu.memory_space<vmem>>, vector<1x128xf32>
    %6 = vector.broadcast %5 : vector<1x128xf32> to vector<256x128xf32>
    %7 = arith.addf %4, %6 : vector<256x128xf32>
    %cst_7 = arith.constant 0.000000e+00 : f32
    %8 = vector.broadcast %cst_7 : f32 to vector<256x128xf32>
    %9 = arith.maximumf %7, %8 : vector<256x128xf32>
    %c0_8 = arith.constant 0 : index
    %c0_9 = arith.constant 0 : index
    %10 = vector.load %arg5[%c0_8, %c0_9] : memref<256x128xf32, #tpu.memory_space<vmem>>, vector<256x128xf32>
    tpu.vector_store %arg5[%c0_8, %c0_9], %9 {strides = array<i32>} : memref<256x128xf32, #tpu.memory_space<vmem>>, vector<256x128xf32>,
    return
  }
  func.func @transform_0(%arg0: i32) -> (i32, i32) {
    %c0_i32 = arith.constant 0 : i32
    %c0_i32_0 = arith.constant 0 : i32
    return %arg0, %c0_i32 : i32, i32
  }
  func.func @transform_1(%arg0: i32) -> (i32, i32) {
    %c0_i32 = arith.constant 0 : i32
    %c0_i32_0 = arith.constant 0 : i32
    %c0_i32_1 = arith.constant 0 : i32
    return %c0_i32, %c0_i32_0 : i32, i32
  }
  func.func @transform_2(%arg0: i32) -> (i32, i32) {
    %c0_i32 = arith.constant 0 : i32
    %c0_i32_0 = arith.constant 0 : i32
    return %arg0, %c0_i32 : i32, i32
  }
  func.func @transform_3(%arg0: i32) -> (i32, i32) {
    %c0_i32 = arith.constant 0 : i32
    %c0_i32_0 = arith.constant 0 : i32
    %c0_i32_1 = arith.constant 0 : i32
    return %c0_i32, %c0_i32_0 : i32, i32
  }
  func.func @transform_4(%arg0: i32) -> (i32, i32) {
    %c0_i32 = arith.constant 0 : i32
    %c0_i32_0 = arith.constant 0 : i32
    return %arg0, %c0_i32 : i32, i32
  }
}

</mosaic_0001>

<llo_original>
// kernel: tpu_custom_call.1
$region0: #{tpu_custom_call.1}
  #allocation0 [shape = 'u32[]', space=smem, size = 0x4, offset = 0x4, fixed_abs, tag = 'smem constant byte address 0x4 - core index']
  #allocation1 [shape = 'u32[144,128]{1,0:T(1,128)}', space=vmem, size = 0x12000, scoped, tag = 'internal scratch']
  %s0 = inlined_call_operand.hbm [shape: bf16[512,128], index: 0, kind: input, shape index: {}]
  %s1 = inlined_call_operand.hbm [shape: bf16[128,128], index: 1, kind: input, shape index: {}]
  %s2 = inlined_call_operand.hbm [shape: f32[512,128], index: 2, kind: input, shape index: {}]
  %s3 = inlined_call_operand.vmem [shape: f32[1,128], index: 3, kind: input, shape index: {}]
  %s4 = inlined_call_operand.hbm [shape: f32[512,128], index: 4, kind: output, shape index: {}]
  %s5 = sld [smem:[#allocation0]]
  $region61: #{tpu_custom_call.1} parent=0
    _
  %s7 = ssub.s32 1, %s5
  %s8 = scalar_select 0, %s7, %s5
  $region1: #{tpu_custom_call.1} parent=0
    #allocation2 [shape = 'u8[131072]{0}', space=vmem, size = 0x20000, scoped, tag = 'input window, operand 0']
    #allocation3 [shape = 's32[2]{0}', space=sflag, size = 0x8, scoped, tag = 'scoped memory for tpu_custom_call.1']
    #allocation4 [shape = 's32[2]{0}', space=sflag, size = 0x8, scoped, tag = 'scoped memory for tpu_custom_call.1']
    #allocation5 [shape = 'u8[32768]{0}', space=vmem, size = 0x8000, scoped, tag = 'input window, operand 1, single buffered']
    #allocation6 [shape = 's32[1]{0}', space=sflag, size = 0x4, scoped, tag = 'scoped memory for tpu_custom_call.1']
    #allocation7 [shape = 'u8[262144]{0}', space=vmem, size = 0x40000, scoped, tag = 'input window, operand 2']
    #allocation8 [shape = 'u8[262144]{0}', space=vmem, size = 0x40000, scoped, tag = 'output window, operand 0']
    %9 = vsyncpa [#allocation3], 0
    %s10 = scalar_lea.sflag [#allocation3], 1
    %11 = vsyncpa %s10, 0
    %12 = vsyncpa [#allocation6], 0
    %13 = vsyncpa [#allocation4], 0
    %s14 = scalar_lea.sflag [#allocation4], 1
    %15 = vsyncpa %s14, 0
    loop: start=0, step=1, limit=4
    $region2: #{tpu_custom_call.1} parent=1 // loop_pre_header
      _
    $region3: #{tpu_custom_call.1} parent=1 // loop_header
      %s17 = sphi 0, %s21
      %p18 = scmp.ge.s32.totalorder %s17, 4
      %s27 = sphi 0, %s29
      %s30 = sphi 0, %s27
      %s31 = sphi 0, %s30
      %s47 = sphi 0, %s31
      %s51 = sphi 0, %s51
      %s53 = sphi 0, %s51
      %s54 = sphi 0, %s53
      %s68 = sphi 0, %s54
      %s74 = sphi 0, %s76
      %s77 = sphi 0, %s74
      %s78 = sphi 0, %s77
      %s94 = sphi 0, %s78
      %s98 = sphi 0, %s98
      %s100 = sphi 0, %s98
      %s101 = sphi 0, %s100
      %s115 = sphi 0, %s101
      %s121 = sphi 0, %s123
      %s124 = sphi 0, %s121
      %s125 = sphi 0, %s124
      %s141 = sphi 0, %s125
    $region4: #{tpu_custom_call.1} parent=1 // loop_header_branch
      %20 = sbr.rel (%p18) target = $region8
    $region5: #{tpu_custom_call.1} parent=1 // loop_body
      %s22 = ssub.s32 %s17, 1
      %s23 = ssub.s32 %s17, 2
      %s24 = sadd.s32 %s17, 1
      %s25 = ssub.s32 %s17, %s24
      %p26 = scmp.eq.s32.totalorder %s25, 0
      %s28 = sadd.s32 %s27, 1
      %s29 = scalar_select %p26, %s27, %s28
      %p32 = pneg %p26
      %p33 = scmp.eq.s32.totalorder %s17, 1
      %p34 = por %p32, %p33
      %p35 = scmp.ne.s32.totalorder %s27, %s30
      %p36 = scmp.eq.s32.totalorder %s17, 0
      %p37 = por %p35, %p36
      %p38 = scmp.ne.s32.totalorder %s27, %s30
      %p39 = scmp.eq.s32.totalorder %s22, 1
      %p40 = por %p38, %p39
      %p41 = scmp.ne.s32.totalorder %s30, %s31
      %p42 = scmp.eq.s32.totalorder %s22, 0
      %p43 = por %p41, %p42
      %p44 = scmp.ne.s32.totalorder %s30, %s31
      %p45 = scmp.eq.s32.totalorder %s23, 1
      %p46 = por %p44, %p45
      %p48 = scmp.ne.s32.totalorder %s31, %s47
      %p49 = scmp.eq.s32.totalorder %s23, 0
      %p50 = por %p48, %p49
      %s52 = sadd.s32 %s51, 1
      %p55 = scmp.eq.s32.totalorder %s17, 1
      %p56 = scmp.ne.s32.totalorder %s51, %s53
      %p57 = scmp.eq.s32.totalorder %s17, 0
      %p58 = por %p56, %p57
      %p59 = scmp.ne.s32.totalorder %s51, %s53
      %p60 = scmp.eq.s32.totalorder %s22, 1
      %p61 = por %p59, %p60
      %p62 = scmp.ne.s32.totalorder %s53, %s54
      %p63 = scmp.eq.s32.totalorder %s22, 0
      %p64 = por %p62, %p63
      %p65 = scmp.ne.s32.totalorder %s53, %s54
      %p66 = scmp.eq.s32.totalorder %s23, 1
      %p67 = por %p65, %p66
      %p69 = scmp.ne.s32.totalorder %s54, %s68
      %p70 = scmp.eq.s32.totalorder %s23, 0
      %p71 = por %p69, %p70
      %s72 = ssub.s32 %s17, %s24
      %p73 = scmp.eq.s32.totalorder %s72, 0
      %s75 = sadd.s32 %s74, 1
      %s76 = scalar_select %p73, %s74, %s75
      %p79 = pneg %p73
      %p80 = scmp.eq.s32.totalorder %s17, 1
      %p81 = por %p79, %p80
      %p82 = scmp.ne.s32.totalorder %s74, %s77
      %p83 = scmp.eq.s32.totalorder %s17, 0
      %p84 = por %p82, %p83
      %p85 = scmp.ne.s32.totalorder %s74, %s77
      %p86 = scmp.eq.s32.totalorder %s22, 1
      %p87 = por %p85, %p86
      %p88 = scmp.ne.s32.totalorder %s77, %s78
      %p89 = scmp.eq.s32.totalorder %s22, 0
      %p90 = por %p88, %p89
      %p91 = scmp.ne.s32.totalorder %s77, %s78
      %p92 = scmp.eq.s32.totalorder %s23, 1
      %p93 = por %p91, %p92
      %p95 = scmp.ne.s32.totalorder %s78, %s94
      %p96 = scmp.eq.s32.totalorder %s23, 0
      %p97 = por %p95, %p96
      %s99 = sadd.s32 %s98, 1
      %p102 = scmp.eq.s32.totalorder %s17, 1
      %p103 = scmp.ne.s32.totalorder %s98, %s100
      %p104 = scmp.eq.s32.totalorder %s17, 0
      %p105 = por %p103, %p104
      %p106 = scmp.ne.s32.totalorder %s98, %s100
      %p107 = scmp.eq.s32.totalorder %s22, 1
      %p108 = por %p106, %p107
      %p109 = scmp.ne.s32.totalorder %s100, %s101
      %p110 = scmp.eq.s32.totalorder %s22, 0
      %p111 = por %p109, %p110
      %p112 = scmp.ne.s32.totalorder %s100, %s101
      %p113 = scmp.eq.s32.totalorder %s23, 1
      %p114 = por %p112, %p113
      %p116 = scmp.ne.s32.totalorder %s101, %s115
      %p117 = scmp.eq.s32.totalorder %s23, 0
      %p118 = por %p116, %p117
      %s119 = ssub.s32 %s17, %s24
      %p120 = scmp.eq.s32.totalorder %s119, 0
      %s122 = sadd.s32 %s121, 1
      %s123 = scalar_select %p120, %s121, %s122
      %p126 = pneg %p120
      %p127 = scmp.eq.s32.totalorder %s17, 1
      %p128 = por %p126, %p127
      %p129 = scmp.ne.s32.totalorder %s121, %s124
      %p130 = scmp.eq.s32.totalorder %s17, 0
      %p131 = por %p129, %p130
      %p132 = scmp.ne.s32.totalorder %s121, %s124
      %p133 = scmp.eq.s32.totalorder %s22, 1
      %p134 = por %p132, %p133
      %p135 = scmp.ne.s32.totalorder %s124, %s125
      %p136 = scmp.eq.s32.totalorder %s22, 0
      %p137 = por %p135, %p136
      %p138 = scmp.ne.s32.totalorder %s124, %s125
      %p139 = scmp.eq.s32.totalorder %s23, 1
      %p140 = por %p138, %p139
      %p142 = scmp.ne.s32.totalorder %s125, %s141
      %p143 = scmp.eq.s32.totalorder %s23, 0
      %p144 = por %p142, %p143
      %p145 = scmp.le.s32.totalorder 1, %s17
      %p146 = scmp.lt.s32.totalorder %s17, 3
      %p147 = pnand %p145, %p146
      %p148 = pneg %p147
      // Predicated region
      $region9: #{tpu_custom_call.1} parent=5 // pred_check
        _
      $region10: #{tpu_custom_call.1} parent=5 // pred_check_branch
        %150 = sbr.rel (%p147) target = $region12
      $region11: #{tpu_custom_call.1} parent=5 // pred_region
        %s151 = ssub.s32 %s17, 1
        // Predicated region
        $region13: #{tpu_custom_call.1} parent=11 // pred_check
          %p152 = pneg %p64
        $region14: #{tpu_custom_call.1} parent=11 // pred_check_branch
          %154 = sbr.rel (%p152) target = $region16
        $region15: #{tpu_custom_call.1} parent=11 // pred_region
          %s156 = ssub.s32 1024, 1024
          %157 = vsyncadd [#allocation6], %s156
          %s158 = sshll.u32 [#allocation5], 4
          %s159 = int_to_ptr.vmem [resolvable:$true] %s158
          %164 = dma.hbm_to_vmem [thread:$0]  %s1, 1024, %s159, [#allocation6], 64, 64, 4
        $region16: #{tpu_custom_call.1} parent=11 // pred_fallthru
          _
        // Predicated region
        $region17: #{tpu_custom_call.1} parent=11 // pred_check
          %p165 = pneg %p111
        $region18: #{tpu_custom_call.1} parent=11 // pred_check_branch
          %167 = sbr.rel (%p165) target = $region20
        $region19: #{tpu_custom_call.1} parent=11 // pred_region
          _
        $region20: #{tpu_custom_call.1} parent=11 // pred_fallthru
          _
      $region12: #{tpu_custom_call.1} parent=5 // pred_fallthru
        _
      %p168 = scmp.lt.s32.totalorder %s17, 2
      // Predicated region
      $region21: #{tpu_custom_call.1} parent=5 // pred_check
        %p169 = pneg %p168
      $region22: #{tpu_custom_call.1} parent=5 // pred_check_branch
        %171 = sbr.rel (%p169) target = $region24
      $region23: #{tpu_custom_call.1} parent=5 // pred_region
        // Predicated region
        $region25: #{tpu_custom_call.1} parent=23 // pred_check
          %p172 = pneg %p37
        $region26: #{tpu_custom_call.1} parent=23 // pred_check_branch
          %174 = sbr.rel (%p172) target = $region28
        $region27: #{tpu_custom_call.1} parent=23 // pred_region
          %s175 = sand.u32 %s17, 1
          %s176 = scalar_lea.sflag [#allocation3], %s175
          %s177 = sand.u32 %s27, 1
          %s178 = smul.addr %s177, 128
          %s179 = scalar_lea.vmem [#allocation2], %s178
          %s180 = smul.u32 32, %s17
          %s182 = ssub.s32 2048, 2048
          %183 = vsyncadd %s176, %s182
          %s184 = smul.addr %s180, 64
          %s185 = scalar_lea.hbm %s0, %s184
          %s186 = sshll.u32 %s179, 4
          %s187 = int_to_ptr.vmem [resolvable:$true] %s186
          %192 = dma.hbm_to_vmem [thread:$0]  %s185, 2048, %s187, %s176, 64, 64, 4
        $region28: #{tpu_custom_call.1} parent=23 // pred_fallthru
          _
        // Predicated region
        $region29: #{tpu_custom_call.1} parent=23 // pred_check
          %p193 = pneg %p84
        $region30: #{tpu_custom_call.1} parent=23 // pred_check_branch
          %195 = sbr.rel (%p193) target = $region32
        $region31: #{tpu_custom_call.1} parent=23 // pred_region
          %s196 = sand.u32 %s17, 1
          %s197 = scalar_lea.sflag [#allocation3], %s196
          %s198 = sand.u32 %s74, 1
          %s199 = smul.addr %s198, 256
          %s200 = scalar_lea.vmem [#allocation7], %s199
          %s201 = smul.u32 32, %s17
          %s203 = ssub.s32 4096, 4096
          %204 = vsyncadd %s197, %s203
          %s205 = smul.addr %s201, 128
          %s206 = scalar_lea.hbm %s2, %s205
          %s207 = sshll.u32 %s200, 4
          %s208 = int_to_ptr.vmem [resolvable:$true] %s207
          %213 = dma.hbm_to_vmem [thread:$0]  %s206, 4096, %s208, %s197, 128, 128, 8
        $region32: #{tpu_custom_call.1} parent=23 // pred_fallthru
          _
      $region24: #{tpu_custom_call.1} parent=5 // pred_fallthru
        _
      %p214 = scmp.le.s32.totalorder 1, %s17
      %p215 = scmp.lt.s32.totalorder %s17, 3
      %p216 = pnand %p214, %p215
      %p217 = pneg %p216
      // Predicated region
      $region33: #{tpu_custom_call.1} parent=5 // pred_check
        _
      $region34: #{tpu_custom_call.1} parent=5 // pred_check_branch
        %219 = sbr.rel (%p216) target = $region36
      $region35: #{tpu_custom_call.1} parent=5 // pred_region
        %s220 = ssub.s32 %s17, 1
        %s221 = sand.u32 %s22, 1
        %s222 = scalar_lea.sflag [#allocation3], %s221
        %s223 = sand.u32 %s30, 1
        %s224 = smul.addr %s223, 128
        %s225 = scalar_lea.vmem [#allocation2], %s224
        // Predicated region
        $region37: #{tpu_custom_call.1} parent=35 // pred_check
          %p226 = pneg %p43
        $region38: #{tpu_custom_call.1} parent=35 // pred_check_branch
          %228 = sbr.rel (%p226) target = $region40
        $region39: #{tpu_custom_call.1} parent=35 // pred_region
          %229 = dma.done %s222, 2048
        $region40: #{tpu_custom_call.1} parent=35 // pred_fallthru
          _
        // Predicated region
        $region41: #{tpu_custom_call.1} parent=35 // pred_check
          %p230 = pneg %p64
        $region42: #{tpu_custom_call.1} parent=35 // pred_check_branch
          %232 = sbr.rel (%p230) target = $region44
        $region43: #{tpu_custom_call.1} parent=35 // pred_region
          %233 = dma.done [#allocation6], 1024
        $region44: #{tpu_custom_call.1} parent=35 // pred_fallthru
          _
        %s234 = sand.u32 %s22, 1
        %s235 = scalar_lea.sflag [#allocation3], %s234
        %s236 = sand.u32 %s77, 1
        %s237 = smul.addr %s236, 256
        %s238 = scalar_lea.vmem [#allocation7], %s237
        // Predicated region
        $region45: #{tpu_custom_call.1} parent=35 // pred_check
          %p239 = pneg %p90
        $region46: #{tpu_custom_call.1} parent=35 // pred_check_branch
          %241 = sbr.rel (%p239) target = $region48
        $region47: #{tpu_custom_call.1} parent=35 // pred_region
          %242 = dma.done %s235, 4096
        $region48: #{tpu_custom_call.1} parent=35 // pred_fallthru
          _
        %s243 = sand.u32 %s22, 1
        %s244 = scalar_lea.sflag [#allocation3], %s243
        %s245 = sand.u32 %s30, 1
        %s246 = smul.addr %s245, 128
        %s247 = scalar_lea.vmem [#allocation2], %s246
        %p248 = pneg %p43
        %p249 = pneg %p40
        %p250 = pneg %p64
        %p251 = pneg %p61
        %s252 = sand.u32 %s22, 1
        %s253 = scalar_lea.sflag [#allocation3], %s252
        %s254 = sand.u32 %s77, 1
        %s255 = smul.addr %s254, 256
        %s256 = scalar_lea.vmem [#allocation7], %s255
        %p257 = pneg %p90
        %p258 = pneg %p87
        %p259 = pneg %p111
        %p260 = pneg %p108
        %p261 = pneg %p137
        %p262 = pneg %p134
        %s263 = sand.u32 %s124, 1
        %s264 = scalar_lea.sflag [#allocation4], %s263
        %s265 = sand.u32 %s124, 1
        %s266 = smul.addr %s265, 256
        %s267 = scalar_lea.vmem [#allocation8], %s266
        %s268 = smul.u32 32, %s22
        %s269 = smul.u32 32, %s22
        %s270 = smul.u32 32, %s22
        %v272 = vld [vmem:[%s225] sm:$0xf]
        %v273 = vld [vmem:[%s225 + $0x4] sm:$0xf]
        %v274 = vld [vmem:[%s225 + $0x8] sm:$0xf]
        %v275 = vld [vmem:[%s225 + $0xc] sm:$0xf]
        %v276 = vld [vmem:[%s225 + $0x10] sm:$0xf]
        %v277 = vld [vmem:[%s225 + $0x14] sm:$0xf]
        %v278 = vld [vmem:[%s225 + $0x18] sm:$0xf]
        %v279 = vld [vmem:[%s225 + $0x1c] sm:$0xf]
        %v280 = vld [vmem:[%s225 + $0x20] sm:$0xf]
        %v281 = vld [vmem:[%s225 + $0x24] sm:$0xf]
        %v282 = vld [vmem:[%s225 + $0x28] sm:$0xf]
        %v283 = vld [vmem:[%s225 + $0x2c] sm:$0xf]
        %v284 = vld [vmem:[%s225 + $0x30] sm:$0xf]
        %v285 = vld [vmem:[%s225 + $0x34] sm:$0xf]
        %v286 = vld [vmem:[%s225 + $0x38] sm:$0xf]
        %v287 = vld [vmem:[%s225 + $0x3c] sm:$0xf]
        %v288 = vld [vmem:[%s225 + $0x40] sm:$0xf]
        %v289 = vld [vmem:[%s225 + $0x44] sm:$0xf]
        %v290 = vld [vmem:[%s225 + $0x48] sm:$0xf]
        %v291 = vld [vmem:[%s225 + $0x4c] sm:$0xf]
        %v292 = vld [vmem:[%s225 + $0x50] sm:$0xf]
        %v293 = vld [vmem:[%s225 + $0x54] sm:$0xf]
        %v294 = vld [vmem:[%s225 + $0x58] sm:$0xf]
        %v295 = vld [vmem:[%s225 + $0x5c] sm:$0xf]
        %v296 = vld [vmem:[%s225 + $0x60] sm:$0xf]
        %v297 = vld [vmem:[%s225 + $0x64] sm:$0xf]
        %v298 = vld [vmem:[%s225 + $0x68] sm:$0xf]
        %v299 = vld [vmem:[%s225 + $0x6c] sm:$0xf]
        %v300 = vld [vmem:[%s225 + $0x70] sm:$0xf]
        %v301 = vld [vmem:[%s225 + $0x74] sm:$0xf]
        %v302 = vld [vmem:[%s225 + $0x78] sm:$0xf]
        %v303 = vld [vmem:[%s225 + $0x7c] sm:$0xf]
        %v304 = vld [vmem:[#allocation5] sm:$0xf]
        %v305 = vld [vmem:[#allocation5 + $0x4] sm:$0xf]
        %v306 = vld [vmem:[#allocation5 + $0x8] sm:$0xf]
        %v307 = vld [vmem:[#allocation5 + $0xc] sm:$0xf]
        %v308 = vld [vmem:[#allocation5 + $0x10] sm:$0xf]
        %v309 = vld [vmem:[#allocation5 + $0x14] sm:$0xf]
        %v310 = vld [vmem:[#allocation5 + $0x18] sm:$0xf]
        %v311 = vld [vmem:[#allocation5 + $0x1c] sm:$0xf]
        %v312 = vld [vmem:[#allocation5 + $0x20] sm:$0xf]
        %v313 = vld [vmem:[#allocation5 + $0x24] sm:$0xf]
        %v314 = vld [vmem:[#allocation5 + $0x28] sm:$0xf]
        %v315 = vld [vmem:[#allocation5 + $0x2c] sm:$0xf]
        %v316 = vld [vmem:[#allocation5 + $0x30] sm:$0xf]
        %v317 = vld [vmem:[#allocation5 + $0x34] sm:$0xf]
        %v318 = vld [vmem:[#allocation5 + $0x38] sm:$0xf]
        %v319 = vld [vmem:[#allocation5 + $0x3c] sm:$0xf]
        %v320 = vld [vmem:[%s238] sm:$0xff]
        %v321 = vld [vmem:[%s238 + $0x8] sm:$0xff]
        %v322 = vld [vmem:[%s238 + $0x10] sm:$0xff]
        %v323 = vld [vmem:[%s238 + $0x18] sm:$0xff]
        %v324 = vld [vmem:[%s238 + $0x20] sm:$0xff]
        %v325 = vld [vmem:[%s238 + $0x28] sm:$0xff]
        %v326 = vld [vmem:[%s238 + $0x30] sm:$0xff]
        %v327 = vld [vmem:[%s238 + $0x38] sm:$0xff]
        %v328 = vld [vmem:[%s238 + $0x40] sm:$0xff]
        %v329 = vld [vmem:[%s238 + $0x48] sm:$0xff]
        %v330 = vld [vmem:[%s238 + $0x50] sm:$0xff]
        %v331 = vld [vmem:[%s238 + $0x58] sm:$0xff]
        %v332 = vld [vmem:[%s238 + $0x60] sm:$0xff]
        %v333 = vld [vmem:[%s238 + $0x68] sm:$0xff]
        %v334 = vld [vmem:[%s238 + $0x70] sm:$0xff]
        %v335 = vld [vmem:[%s238 + $0x78] sm:$0xff]
        %v336 = vld [vmem:[%s238 + $0x80] sm:$0xff]
        %v337 = vld [vmem:[%s238 + $0x88] sm:$0xff]
        %v338 = vld [vmem:[%s238 + $0x90] sm:$0xff]
        %v339 = vld [vmem:[%s238 + $0x98] sm:$0xff]
        %v340 = vld [vmem:[%s238 + $0xa0] sm:$0xff]
        %v341 = vld [vmem:[%s238 + $0xa8] sm:$0xff]
        %v342 = vld [vmem:[%s238 + $0xb0] sm:$0xff]
        %v343 = vld [vmem:[%s238 + $0xb8] sm:$0xff]
        %v344 = vld [vmem:[%s238 + $0xc0] sm:$0xff]
        %v345 = vld [vmem:[%s238 + $0xc8] sm:$0xff]
        %v346 = vld [vmem:[%s238 + $0xd0] sm:$0xff]
        %v347 = vld [vmem:[%s238 + $0xd8] sm:$0xff]
        %v348 = vld [vmem:[%s238 + $0xe0] sm:$0xff]
        %v349 = vld [vmem:[%s238 + $0xe8] sm:$0xff]
        %v350 = vld [vmem:[%s238 + $0xf0] sm:$0xff]
        %v351 = vld [vmem:[%s238 + $0xf8] sm:$0xff]
        %v384 = vunpack.c.l.b16 %v272
        %v385 = vunpack.c.l.b16 %v273
        %v386 = vunpack.c.l.b16 %v274
        %v387 = vunpack.c.l.b16 %v275
        %v388 = vunpack.c.l.b16 %v276
        %v389 = vunpack.c.l.b16 %v277
        %v390 = vunpack.c.l.b16 %v278
        %v391 = vunpack.c.l.b16 %v279
        %v392 = vunpack.c.l.b16 %v280
        %v393 = vunpack.c.l.b16 %v281
        %v394 = vunpack.c.l.b16 %v282
        %v395 = vunpack.c.l.b16 %v283
        %v396 = vunpack.c.l.b16 %v284
        %v397 = vunpack.c.l.b16 %v285
        %v398 = vunpack.c.l.b16 %v286
        %v399 = vunpack.c.l.b16 %v287
        %v400 = vunpack.c.l.b16 %v288
        %v401 = vunpack.c.l.b16 %v289
        %v402 = vunpack.c.l.b16 %v290
        %v403 = vunpack.c.l.b16 %v291
        %v404 = vunpack.c.l.b16 %v292
        %v405 = vunpack.c.l.b16 %v293
        %v406 = vunpack.c.l.b16 %v294
        %v407 = vunpack.c.l.b16 %v295
        %v408 = vunpack.c.l.b16 %v296
        %v409 = vunpack.c.l.b16 %v297
        %v410 = vunpack.c.l.b16 %v298
        %v411 = vunpack.c.l.b16 %v299
        %v412 = vunpack.c.l.b16 %v300
        %v413 = vunpack.c.l.b16 %v301
        %v414 = vunpack.c.l.b16 %v302
        %v415 = vunpack.c.l.b16 %v303
        %v416 = vpack.c.b16 %v385, %v384
        %v417 = vpack.c.b16 %v387, %v386
        %v418 = vpack.c.b16 %v389, %v388
        %v419 = vpack.c.b16 %v391, %v390
        %v420 = vpack.c.b16 %v393, %v392
        %v421 = vpack.c.b16 %v395, %v394
        %v422 = vpack.c.b16 %v397, %v396
        %v423 = vpack.c.b16 %v399, %v398
        %v424 = vpack.c.b16 %v401, %v400
        %v425 = vpack.c.b16 %v403, %v402
        %v426 = vpack.c.b16 %v405, %v404
        %v427 = vpack.c.b16 %v407, %v406
        %v428 = vpack.c.b16 %v409, %v408
        %v429 = vpack.c.b16 %v411, %v410
        %v430 = vpack.c.b16 %v413, %v412
        %v431 = vpack.c.b16 %v415, %v414
        %v464 = vunpack.c.l.b16 %v304
        %v465 = vunpack.c.l.b16 %v305
        %v466 = vunpack.c.l.b16 %v306
        %v467 = vunpack.c.l.b16 %v307
        %v468 = vunpack.c.l.b16 %v308
        %v469 = vunpack.c.l.b16 %v309
        %v470 = vunpack.c.l.b16 %v310
        %v471 = vunpack.c.l.b16 %v311
        %v472 = vunpack.c.l.b16 %v312
        %v473 = vunpack.c.l.b16 %v313
        %v474 = vunpack.c.l.b16 %v314
        %v475 = vunpack.c.l.b16 %v315
        %v476 = vunpack.c.l.b16 %v316
        %v477 = vunpack.c.l.b16 %v317
        %v478 = vunpack.c.l.b16 %v318
        %v479 = vunpack.c.l.b16 %v319
        %v480 = vpack.c.b16 %v465, %v464
        %v481 = vpack.c.b16 %v467, %v466
        %v482 = vpack.c.b16 %v469, %v468
        %v483 = vpack.c.b16 %v471, %v470
        %v484 = vpack.c.b16 %v473, %v472
        %v485 = vpack.c.b16 %v475, %v474
        %v486 = vpack.c.b16 %v477, %v476
        %v487 = vpack.c.b16 %v479, %v478
        %496 = vmatprep.subr.bf16.mxu0 0
        %497 = vmatpush1.bf16.msra.mxu0 %v480
        %498 = vmatprep.subr.bf16.mxu0 0
        %499 = vmatpush1.bf16.msra.mxu0 %v481
        %500 = vmatprep.subr.bf16.mxu0 0
        %501 = vmatpush1.bf16.msra.mxu0 %v482
        %502 = vmatprep.subr.bf16.mxu0 0
        %503 = vmatpush1.bf16.msra.mxu0 %v483
        %504 = vmatprep.subr.bf16.mxu0 0
        %505 = vmatpush1.bf16.msra.mxu0 %v484
        %506 = vmatprep.subr.bf16.mxu0 0
        %507 = vmatpush1.bf16.msra.mxu0 %v485
        %508 = vmatprep.subr.bf16.mxu0 0
        %509 = vmatpush1.bf16.msra.mxu0 %v486
        %510 = vmatprep.subr.bf16.mxu0 0
        %511 = vmatpush1.bf16.msra.mxu0 %v487
        %512 = vmatprep.subr.bf16.mxu0 0
        %513 = vmatpush1.bf16.msra.mxu0 0
        %514 = vmatprep.subr.bf16.mxu0 0
        %515 = vmatpush1.bf16.msra.mxu0 0
        %516 = vmatprep.subr.bf16.mxu0 0
        %517 = vmatpush1.bf16.msra.mxu0 0
        %518 = vmatprep.subr.bf16.mxu0 0
        %519 = vmatpush1.bf16.msra.mxu0 0
        %520 = vmatprep.subr.bf16.mxu0 0
        %521 = vmatpush1.bf16.msra.mxu0 0
        %522 = vmatprep.subr.bf16.mxu0 0
        %523 = vmatpush1.bf16.msra.mxu0 0
        %524 = vmatprep.subr.bf16.mxu0 0
        %525 = vmatpush1.bf16.msra.mxu0 0
        %526 = vmatprep.subr.bf16.mxu0 0
        %527 = vmatpush1.bf16.msra.mxu0 0
        %528 = vmatprep.mubr.bf16.mxu0 0
        %529 = vmatmul.mubr.bf16.gmra.mrb[0].mxu0 %v416
        %v530 = vpop.f32.mrb[0].mxu0
        %v531 = vadd.f32 %v320, %v530
        %v532 = vpop.f32.mrb[0].mxu0
        %v533 = vpop.f32.mrb[0].mxu0
        %v534 = vadd.f32 %v321, %v533
        %v535 = vpop.f32.mrb[0].mxu0
        %536 = vmatprep.mubr.bf16.mxu0 0
        %537 = vmatmul.mubr.bf16.gmra.mrb[0].mxu0 %v417
        %v538 = vpop.f32.mrb[0].mxu0
        %v539 = vadd.f32 %v322, %v538
        %v540 = vpop.f32.mrb[0].mxu0
        %v541 = vpop.f32.mrb[0].mxu0
        %v542 = vadd.f32 %v323, %v541
        %v543 = vpop.f32.mrb[0].mxu0
        %544 = vmatprep.mubr.bf16.mxu0 0
        %545 = vmatmul.mubr.bf16.gmra.mrb[0].mxu0 %v418
        %v546 = vpop.f32.mrb[0].mxu0
        %v547 = vadd.f32 %v324, %v546
        %v548 = vpop.f32.mrb[0].mxu0
        %v549 = vpop.f32.mrb[0].mxu0
        %v550 = vadd.f32 %v325, %v549
        %v551 = vpop.f32.mrb[0].mxu0
        %552 = vmatprep.mubr.bf16.mxu0 0
        %553 = vmatmul.mubr.bf16.gmra.mrb[0].mxu0 %v419
        %v554 = vpop.f32.mrb[0].mxu0
        %v555 = vadd.f32 %v326, %v554
        %v556 = vpop.f32.mrb[0].mxu0
        %v557 = vpop.f32.mrb[0].mxu0
        %v558 = vadd.f32 %v327, %v557
        %v559 = vpop.f32.mrb[0].mxu0
        %560 = vmatprep.mubr.bf16.mxu0 0
        %561 = vmatmul.mubr.bf16.gmra.mrb[0].mxu0 %v420
        %v562 = vpop.f32.mrb[0].mxu0
        %v563 = vadd.f32 %v328, %v562
        %v564 = vpop.f32.mrb[0].mxu0
        %v565 = vpop.f32.mrb[0].mxu0
        %v566 = vadd.f32 %v329, %v565
        %v567 = vpop.f32.mrb[0].mxu0
        %568 = vmatprep.mubr.bf16.mxu0 0
        %569 = vmatmul.mubr.bf16.gmra.mrb[0].mxu0 %v421
        %v570 = vpop.f32.mrb[0].mxu0
        %v571 = vadd.f32 %v330, %v570
        %v572 = vpop.f32.mrb[0].mxu0
        %v573 = vpop.f32.mrb[0].mxu0
        %v574 = vadd.f32 %v331, %v573
        %v575 = vpop.f32.mrb[0].mxu0
        %576 = vmatprep.mubr.bf16.mxu0 0
        %577 = vmatmul.mubr.bf16.gmra.mrb[0].mxu0 %v422
        %v578 = vpop.f32.mrb[0].mxu0
        %v579 = vadd.f32 %v332, %v578
        %v580 = vpop.f32.mrb[0].mxu0
        %v581 = vpop.f32.mrb[0].mxu0
        %v582 = vadd.f32 %v333, %v581
        %v583 = vpop.f32.mrb[0].mxu0
        %584 = vmatprep.mubr.bf16.mxu0 0
        %585 = vmatmul.mubr.bf16.gmra.mrb[0].mxu0 %v423
        %v586 = vpop.f32.mrb[0].mxu0
        %v587 = vadd.f32 %v334, %v586
        %v588 = vpop.f32.mrb[0].mxu0
        %v589 = vpop.f32.mrb[0].mxu0
        %v590 = vadd.f32 %v335, %v589
        %v591 = vpop.f32.mrb[0].mxu0
        %592 = vmatprep.mubr.bf16.mxu0 0
        %593 = vmatmul.mubr.bf16.gmra.mrb[0].mxu0 %v424
        %v594 = vpop.f32.mrb[0].mxu0
        %v595 = vadd.f32 %v336, %v594
        %v596 = vpop.f32.mrb[0].mxu0
        %v597 = vpop.f32.mrb[0].mxu0
        %v598 = vadd.f32 %v337, %v597
        %v599 = vpop.f32.mrb[0].mxu0
        %600 = vmatprep.mubr.bf16.mxu0 0
        %601 = vmatmul.mubr.bf16.gmra.mrb[0].mxu0 %v425
        %v602 = vpop.f32.mrb[0].mxu0
        %v603 = vadd.f32 %v338, %v602
        %v604 = vpop.f32.mrb[0].mxu0
        %v605 = vpop.f32.mrb[0].mxu0
        %v606 = vadd.f32 %v339, %v605
        %v607 = vpop.f32.mrb[0].mxu0
        %608 = vmatprep.mubr.bf16.mxu0 0
        %609 = vmatmul.mubr.bf16.gmra.mrb[0].mxu0 %v426
        %v610 = vpop.f32.mrb[0].mxu0
        %v611 = vadd.f32 %v340, %v610
        %v612 = vpop.f32.mrb[0].mxu0
        %v613 = vpop.f32.mrb[0].mxu0
        %v614 = vadd.f32 %v341, %v613
        %v615 = vpop.f32.mrb[0].mxu0
        %616 = vmatprep.mubr.bf16.mxu0 0
        %617 = vmatmul.mubr.bf16.gmra.mrb[0].mxu0 %v427
        %v618 = vpop.f32.mrb[0].mxu0
        %v619 = vadd.f32 %v342, %v618
        %v620 = vpop.f32.mrb[0].mxu0
        %v621 = vpop.f32.mrb[0].mxu0
        %v622 = vadd.f32 %v343, %v621
        %v623 = vpop.f32.mrb[0].mxu0
        %624 = vmatprep.mubr.bf16.mxu0 0
        %625 = vmatmul.mubr.bf16.gmra.mrb[0].mxu0 %v428
        %v626 = vpop.f32.mrb[0].mxu0
        %v627 = vadd.f32 %v344, %v626
        %v628 = vpop.f32.mrb[0].mxu0
        %v629 = vpop.f32.mrb[0].mxu0
        %v630 = vadd.f32 %v345, %v629
        %v631 = vpop.f32.mrb[0].mxu0
        %632 = vmatprep.mubr.bf16.mxu0 0
        %633 = vmatmul.mubr.bf16.gmra.mrb[0].mxu0 %v429
        %v634 = vpop.f32.mrb[0].mxu0
        %v635 = vadd.f32 %v346, %v634
        %v636 = vpop.f32.mrb[0].mxu0
        %v637 = vpop.f32.mrb[0].mxu0
        %v638 = vadd.f32 %v347, %v637
        %v639 = vpop.f32.mrb[0].mxu0
        %640 = vmatprep.mubr.bf16.mxu0 0
        %641 = vmatmul.mubr.bf16.gmra.mrb[0].mxu0 %v430
        %v642 = vpop.f32.mrb[0].mxu0
        %v643 = vadd.f32 %v348, %v642
        %v644 = vpop.f32.mrb[0].mxu0
        %v645 = vpop.f32.mrb[0].mxu0
        %v646 = vadd.f32 %v349, %v645
        %v647 = vpop.f32.mrb[0].mxu0
        %648 = vmatprep.mubr.bf16.mxu0 0
        %649 = vmatmul.mubr.bf16.gmra.mrb[0].mxu0 %v431
        %v650 = vpop.f32.mrb[0].mxu0
        %v651 = vadd.f32 %v350, %v650
        %v652 = vpop.f32.mrb[0].mxu0
        %v653 = vpop.f32.mrb[0].mxu0
        %v654 = vadd.f32 %v351, %v653
        %v655 = vpop.f32.mrb[0].mxu0
        %656 = vdwg.mxu0
        %v657 = vld [vmem:[%s3] sm:$0x1]
        %v659 = vlaneseq
        %v660 = vshrl.u32 %v659, 7
        %v661 = vsub.s32 0, %v660
        %v662 = vrot.slane %v657, %v661
        %v664 = vadd.f32 %v531, %v662
        %v665 = vadd.f32 %v534, %v662
        %v666 = vadd.f32 %v539, %v662
        %v667 = vadd.f32 %v542, %v662
        %v668 = vadd.f32 %v547, %v662
        %v669 = vadd.f32 %v550, %v662
        %v670 = vadd.f32 %v555, %v662
        %v671 = vadd.f32 %v558, %v662
        %v672 = vadd.f32 %v563, %v662
        %v673 = vadd.f32 %v566, %v662
        %v674 = vadd.f32 %v571, %v662
        %v675 = vadd.f32 %v574, %v662
        %v676 = vadd.f32 %v579, %v662
        %v677 = vadd.f32 %v582, %v662
        %v678 = vadd.f32 %v587, %v662
        %v679 = vadd.f32 %v590, %v662
        %v680 = vadd.f32 %v595, %v662
        %v681 = vadd.f32 %v598, %v662
        %v682 = vadd.f32 %v603, %v662
        %v683 = vadd.f32 %v606, %v662
        %v684 = vadd.f32 %v611, %v662
        %v685 = vadd.f32 %v614, %v662
        %v686 = vadd.f32 %v619, %v662
        %v687 = vadd.f32 %v622, %v662
        %v688 = vadd.f32 %v627, %v662
        %v689 = vadd.f32 %v630, %v662
        %v690 = vadd.f32 %v635, %v662
        %v691 = vadd.f32 %v638, %v662
        %v692 = vadd.f32 %v643, %v662
        %v693 = vadd.f32 %v646, %v662
        %v694 = vadd.f32 %v651, %v662
        %v695 = vadd.f32 %v654, %v662
        %v696 = vmax.f32 %v664, 0.0
        %v697 = vmax.f32 %v665, 0.0
        %v698 = vmax.f32 %v666, 0.0
        %v699 = vmax.f32 %v667, 0.0
        %v700 = vmax.f32 %v668, 0.0
        %v701 = vmax.f32 %v669, 0.0
        %v702 = vmax.f32 %v670, 0.0
        %v703 = vmax.f32 %v671, 0.0
        %v704 = vmax.f32 %v672, 0.0
        %v705 = vmax.f32 %v673, 0.0
        %v706 = vmax.f32 %v674, 0.0
        %v707 = vmax.f32 %v675, 0.0
        %v708 = vmax.f32 %v676, 0.0
        %v709 = vmax.f32 %v677, 0.0
        %v710 = vmax.f32 %v678, 0.0
        %v711 = vmax.f32 %v679, 0.0
        %v712 = vmax.f32 %v680, 0.0
        %v713 = vmax.f32 %v681, 0.0
        %v714 = vmax.f32 %v682, 0.0
        %v715 = vmax.f32 %v683, 0.0
        %v716 = vmax.f32 %v684, 0.0
        %v717 = vmax.f32 %v685, 0.0
        %v718 = vmax.f32 %v686, 0.0
        %v719 = vmax.f32 %v687, 0.0
        %v720 = vmax.f32 %v688, 0.0
        %v721 = vmax.f32 %v689, 0.0
        %v722 = vmax.f32 %v690, 0.0
        %v723 = vmax.f32 %v691, 0.0
        %v724 = vmax.f32 %v692, 0.0
        %v725 = vmax.f32 %v693, 0.0
        %v726 = vmax.f32 %v694, 0.0
        %v727 = vmax.f32 %v695, 0.0
        %728 = vst [vmem:[%s267] sm:$0xff] %v696
        %729 = vst [vmem:[%s267 + $0x8] sm:$0xff] %v697
        %730 = vst [vmem:[%s267 + $0x10] sm:$0xff] %v698
        %731 = vst [vmem:[%s267 + $0x18] sm:$0xff] %v699
        %732 = vst [vmem:[%s267 + $0x20] sm:$0xff] %v700
        %733 = vst [vmem:[%s267 + $0x28] sm:$0xff] %v701
        %734 = vst [vmem:[%s267 + $0x30] sm:$0xff] %v702
        %735 = vst [vmem:[%s267 + $0x38] sm:$0xff] %v703
        %736 = vst [vmem:[%s267 + $0x40] sm:$0xff] %v704
        %737 = vst [vmem:[%s267 + $0x48] sm:$0xff] %v705
        %738 = vst [vmem:[%s267 + $0x50] sm:$0xff] %v706
        %739 = vst [vmem:[%s267 + $0x58] sm:$0xff] %v707
        %740 = vst [vmem:[%s267 + $0x60] sm:$0xff] %v708
        %741 = vst [vmem:[%s267 + $0x68] sm:$0xff] %v709
        %742 = vst [vmem:[%s267 + $0x70] sm:$0xff] %v710
        %743 = vst [vmem:[%s267 + $0x78] sm:$0xff] %v711
        %744 = vst [vmem:[%s267 + $0x80] sm:$0xff] %v712
        %745 = vst [vmem:[%s267 + $0x88] sm:$0xff] %v713
        %746 = vst [vmem:[%s267 + $0x90] sm:$0xff] %v714
        %747 = vst [vmem:[%s267 + $0x98] sm:$0xff] %v715
        %748 = vst [vmem:[%s267 + $0xa0] sm:$0xff] %v716
        %749 = vst [vmem:[%s267 + $0xa8] sm:$0xff] %v717
        %750 = vst [vmem:[%s267 + $0xb0] sm:$0xff] %v718
        %751 = vst [vmem:[%s267 + $0xb8] sm:$0xff] %v719
        %752 = vst [vmem:[%s267 + $0xc0] sm:$0xff] %v720
        %753 = vst [vmem:[%s267 + $0xc8] sm:$0xff] %v721
        %754 = vst [vmem:[%s267 + $0xd0] sm:$0xff] %v722
        %755 = vst [vmem:[%s267 + $0xd8] sm:$0xff] %v723
        %756 = vst [vmem:[%s267 + $0xe0] sm:$0xff] %v724
        %757 = vst [vmem:[%s267 + $0xe8] sm:$0xff] %v725
        %758 = vst [vmem:[%s267 + $0xf0] sm:$0xff] %v726
        %759 = vst [vmem:[%s267 + $0xf8] sm:$0xff] %v727
        %s760 = sand.u32 %s124, 1
        %s761 = scalar_lea.sflag [#allocation4], %s760
        %s762 = sand.u32 %s124, 1
        %s763 = smul.addr %s762, 256
        %s764 = scalar_lea.vmem [#allocation8], %s763
        // Predicated region
        $region49: #{tpu_custom_call.1} parent=35 // pred_check
          %p765 = pneg %p134
        $region50: #{tpu_custom_call.1} parent=35 // pred_check_branch
          %767 = sbr.rel (%p765) target = $region52
        $region51: #{tpu_custom_call.1} parent=35 // pred_region
          %s768 = smul.u32 32, %s22
          %s770 = ssub.s32 4096, 4096
          %771 = vsyncadd %s761, %s770
          %s772 = smul.addr %s768, 128
          %s773 = scalar_lea.hbm %s4, %s772
          %s774 = sshll.u32 %s764, 4
          %s775 = int_to_ptr.vmem [resolvable:$true] %s774
          %780 = dma.vmem_to_hbm [thread:$0]  %s775, 4096, %s773, %s761, 128, 128, 8
        $region52: #{tpu_custom_call.1} parent=35 // pred_fallthru
          _
      $region36: #{tpu_custom_call.1} parent=5 // pred_fallthru
        _
      %p781 = scmp.le.s32.totalorder 2, %s17
      // Predicated region
      $region53: #{tpu_custom_call.1} parent=5 // pred_check
        %p782 = pneg %p781
      $region54: #{tpu_custom_call.1} parent=5 // pred_check_branch
        %784 = sbr.rel (%p782) target = $region56
      $region55: #{tpu_custom_call.1} parent=5 // pred_region
        %s785 = ssub.s32 %s17, 2
        // Predicated region
        $region57: #{tpu_custom_call.1} parent=55 // pred_check
          %p786 = pneg %p140
        $region58: #{tpu_custom_call.1} parent=55 // pred_check_branch
          %788 = sbr.rel (%p786) target = $region60
        $region59: #{tpu_custom_call.1} parent=55 // pred_region
          %s789 = sand.u32 %s125, 1
          %s790 = scalar_lea.sflag [#allocation4], %s789
          %s791 = sand.u32 %s125, 1
          %s792 = smul.addr %s791, 256
          %s793 = scalar_lea.vmem [#allocation8], %s792
          %794 = dma.done %s790, 4096
        $region60: #{tpu_custom_call.1} parent=55 // pred_fallthru
          _
      $region56: #{tpu_custom_call.1} parent=5 // pred_fallthru
        _
    $region6: #{tpu_custom_call.1} parent=1 // loop_footer
      %s21 = sadd.s32 1, %s17
    $region7: #{tpu_custom_call.1} parent=1 // loop_footer_branch
      %16 = sbr.rel target = $region3
    $region8: #{tpu_custom_call.1} parent=1 // loop_exit
      _
    %795 = vsyncpa [#allocation3], 1
    %s796 = scalar_lea.sflag [#allocation3], 1
    %797 = vsyncpa %s796, 1
    %798 = vsyncpa [#allocation6], 1
    %799 = vsyncpa [#allocation4], 1
    %s800 = scalar_lea.sflag [#allocation4], 1
    %801 = vsyncpa %s800, 1

</llo_original>
